<compile_context>
chip_gen: v6e
topology: v6e:2x2x1
jax: 0.10.0
libtpu: 0.0.40
codegen_flags: <defaults>
</compile_context>

<pallas_src>
import math

import jax
import jax.numpy as jnp
from jax import lax
from jax.experimental import pallas as pl
from jax.experimental.pallas import tpu as pltpu

LANE = 128
TM_TARGET = 2048   # rows per focal tile
NUM_CORES = 2      # leading "parallel" grid axis; harmless on single-TC v5e/v6e
CHUNK_HW = 2048    # spatial chunk for the reg-L1 one-hot gather


def _cdiv(a, b):
    return -(-a // b)


def _round_up(a, b):
    return _cdiv(a, b) * b


# --------------------------------------------------------------------------------------
# Kernel 1: focal loss over the heatmap, fused over all stacks
#   grid = (NUM_CORES, tiles_per_core); per-core partial sums -> tiny JAX epilogue
# --------------------------------------------------------------------------------------
def _make_focal_kernel(num_stacks, tm, rows, tiles_per_core, ragged):
    LOG_EPS = math.log(1e-4)           # log of the clamp floor
    LOG_1M_EPS = math.log(1.0 - 1e-4)  # log of the clamp ceiling

    def kernel(*refs):
        gt_ref = refs[0]
        logit_refs = refs[1:1 + num_stacks]
        out_ref = refs[1 + num_stacks]          # (1, 1, num_stacks + 1) SMEM block
        acc_ref = refs[2 + num_stacks]          # (num_stacks + 1, tm, LANE) VMEM scratch

        c = pl.program_id(0)
        i = pl.program_id(1)

        @pl.when(i == 0)
        def _():
            acc_ref[...] = jnp.zeros_like(acc_ref)

        gt = gt_ref[...].astype(jnp.float32)

        pos_ind = gt == 1.0
        neg_ind = gt < 1.0
        if ragged:
            # Mask logical rows past the real array (partial last tile / surplus tiles of
            # the clamped index map). Narrow (tm, 1) iota; broadcasts into the logical_and.
            # The where() selects below keep any OOB garbage (incl. NaN) out of the sums.
            row0 = (c * tiles_per_core + i) * tm
            rid = lax.broadcasted_iota(jnp.int32, (tm, 1), 0) + row0
            valid = rid < rows                                  # (tm, 1)
            pos_ind = jnp.logical_and(pos_ind, valid)
            neg_ind = jnp.logical_and(neg_ind, valid)

        neg_w = jnp.square(jnp.square(1.0 - gt))                # (1 - gt)^4, shared by all stacks

        # num_pos depends only on gt -> accumulated once per tile (pure VPU add)
        acc_ref[num_stacks] = acc_ref[num_stacks] + jnp.where(pos_ind, 1.0, 0.0)

        for s in range(num_stacks):
            x = logit_refs[s][...].astype(jnp.float32)
            # _sigmoid: pred = clamp(sigmoid(x), 1e-4, 1 - 1e-4)
            sig = 1.0 / (1.0 + jnp.exp(-x))
            pred = jnp.clip(sig, 1e-4, 1.0 - 1e-4)
            # Single log per element:
            #   log(pred)     = log(sigmoid(x))          (mid region)
            #   log(1 - pred) = log(sigmoid(x)) - x      (mid region)
            # with the clamp regions replaced by the exact constants.
            log_sig = jnp.log(sig)
            lo = sig < 1e-4
            hi = sig > 1.0 - 1e-4
            log_pred = jnp.where(lo, LOG_EPS, jnp.where(hi, LOG_1M_EPS, log_sig))
            log_1m = jnp.where(hi, LOG_EPS, jnp.where(lo, LOG_1M_EPS, log_sig - x))

            pos_term = log_pred * jnp.square(1.0 - pred)
            neg_term = log_1m * jnp.square(pred) * neg_w
            acc_ref[s] = acc_ref[s] + (jnp.where(pos_ind, pos_term, 0.0)
                                       + jnp.where(neg_ind, neg_term, 0.0))

        @pl.when(i == tiles_per_core - 1)
        def _():
            # Single cross-lane reduce per accumulator, once per core.
            for j in range(num_stacks + 1):
                out_ref[0, 0, j] = jnp.sum(acc_ref[j])

    return kernel


def focal_loss_multi(hm_logits_list, gt_hm):
    """Per-stack CenterNet focal losses, one fused pallas_call. Returns (num_stacks,) f32."""
    num_stacks = len(hm_logits_list)
    n = int(gt_hm.size)
    n_pad = _round_up(n, LANE)
    lane_pad = n_pad - n
    rows = n_pad // LANE

    def to2d(x, pad_value):
        flat = x.reshape(-1)
        if lane_pad:
            # Rare path (only when numel % 128 != 0). gt sentinel 2.0 makes both
            # (gt == 1) and (gt < 1) false on padding, so no `valid` input is needed.
            flat = jnp.concatenate(
                [flat, jnp.full((lane_pad,), pad_value, dtype=flat.dtype)])
        return flat.reshape(rows, LANE)

    gt2 = to2d(gt_hm, 2.0)                         # padded once, shared by all stacks
    logits2 = [to2d(x, 0.0) for x in hm_logits_list]

    tm = min(TM_TARGET, _round_up(rows, 8))
    tiles = _cdiv(rows, tm)
    tiles_per_core = _cdiv(tiles, NUM_CORES)
    ragged = (NUM_CORES * tiles_per_core * tm) != rows

    def in_map(c, i):
        # Clamp so a core's surplus tiles re-read the last real tile; the in-kernel
        # row mask zeroes their contribution.
        t = c * tiles_per_core + i
        return (jnp.minimum(t, tiles - 1), 0)

    kernel = _make_focal_kernel(num_stacks, tm, rows, tiles_per_core, ragged)

    bytes_in = int(gt2.size * gt2.dtype.itemsize
                   + sum(int(l.size) * l.dtype.itemsize for l in logits2))
    cost = pl.CostEstimate(flops=int(n) * num_stacks * 20,
                           transcendentals=int(n) * num_stacks * 2,
                           bytes_accessed=bytes_in)

    # TODO(synk): on v7x, try dimension_semantics=(pltpu.CORE_PARALLEL, pltpu.ARBITRARY)
    # (or an explicit core_map split) so the leading axis is guaranteed to shard across
    # both TensorCores; kept as "parallel" here for portability across generations.
    partials = pl.pallas_call(
        kernel,
        out_shape=jax.ShapeDtypeStruct((NUM_CORES, 1, num_stacks + 1), jnp.float32),
        grid=(NUM_CORES, tiles_per_core),
        in_specs=[pl.BlockSpec((tm, LANE), in_map)] * (1 + num_stacks),
        out_specs=pl.BlockSpec((1, 1, num_stacks + 1), lambda c, i: (c, 0, 0),
                               memory_space=pltpu.MemorySpace.SMEM),
        scratch_shapes=[pltpu.VMEM((num_stacks + 1, tm, LANE), jnp.float32)],
        compiler_params=pltpu.CompilerParams(
            dimension_semantics=("parallel", "arbitrary"),
            vmem_limit_bytes=32 * 1024 * 1024),
        cost_estimate=cost,
    )(gt2, *logits2)

    sums = jnp.sum(partials[:, 0, :], axis=0)      # (num_stacks + 1,)
    num_pos = sums[num_stacks]
    # PyTorch _neg_loss: when num_pos == 0 the positive sum is 0, so dividing by
    # max(num_pos, 1) reproduces both branches exactly.
    return -sums[:num_stacks] / jnp.maximum(num_pos, 1.0)


# --------------------------------------------------------------------------------------
# Kernel 2: RegL1Loss fused over all stacks — HW-chunked one-hot gather on the MXU
#   grid = (HW_pad // chunk,); per-chunk one-hot accumulated into a tiny VMEM scratch
# --------------------------------------------------------------------------------------
def _make_reg_l1_kernel(num_stacks, C, chunk):
    def kernel(ind_ref, mask_ref, tgt_ref, reg_ref, out_ref, acc_ref):
        # ind_ref : (B, 1, K) int32           (resident, same block every step)
        # mask_ref: (B, 1, K)
        # tgt_ref : (B, C, K)
        # reg_ref : (B, S*C, chunk) block j   (all stacks fused along the channel axis)
        # out_ref : (num_stacks,) SMEM
        # acc_ref : (B, S*C, K) f32 VMEM      (gathered predictions, accumulated over chunks)
        j = pl.program_id(0)

        @pl.when(j == 0)
        def _():
            acc_ref[...] = jnp.zeros_like(acc_ref)

        B = reg_ref.shape[0]
        K = ind_ref.shape[2]

        reg = reg_ref[...]
        if reg.dtype == jnp.bfloat16:
            oh_dtype = jnp.bfloat16          # exact: one-hot entries are 0/1, acc stays f32
        else:
            reg = reg.astype(jnp.float32)
            oh_dtype = jnp.float32

        ind = ind_ref[...]                                     # (B, 1, K) int32
        base = j * chunk
        hw_iota = lax.broadcasted_iota(jnp.int32, (B, chunk, K), 1) + base
        onehot = (hw_iota == ind).astype(oh_dtype)             # (B, chunk, K)

        # pred[b, c, k] += sum_h reg[b, c, base+h] * onehot[b, h, k]
        # (single batched MXU contraction shared by all stacks)
        pred = lax.dot_general(
            reg, onehot,
            dimension_numbers=(((2,), (1,)), ((0,), (0,))),
            preferred_element_type=jnp.float32,
        )                                                      # (B, S*C, K)
        acc_ref[...] = acc_ref[...] + pred

        @pl.when(j == pl.num_programs(0) - 1)
        def _():
            mask = mask_ref[...].astype(jnp.float32)           # (B, 1, K)
            tgt = tgt_ref[...].astype(jnp.float32)             # (B, C, K)
            inv_denom = 1.0 / (jnp.sum(mask) * jnp.float32(C) + jnp.float32(1e-4))
            pred_all = acc_ref[...]                            # (B, S*C, K)
            for s in range(num_stacks):
                p = pred_all[:, s * C:(s + 1) * C, :]
                # mask is 0/1, so |p - tgt| * mask == |p*mask - tgt*mask|
                out_ref[s] = jnp.sum(jnp.abs(p - tgt) * mask) * inv_denom

    return kernel


def reg_l1_loss_multi(reg_list, reg_mask, ind, reg_target):
    """Per-stack RegL1 losses in one pallas_call. Returns (num_stacks,) f32."""
    num_stacks = len(reg_list)
    B, C, H, W = reg_list[0].shape
    K = ind.shape[1]
    HW = H * W
    SC = num_stacks * C

    # Fuse stacks along the channel (sublane) axis so the one-hot is streamed through
    # the MXU exactly once per chunk.
    reg_all = jnp.concatenate([r.reshape(B, C, HW) for r in reg_list], axis=1)  # (B, SC, HW)

    if HW > CHUNK_HW:
        chunk = CHUNK_HW                             # multiple of 128
        hw_pad = _round_up(HW, chunk)
        if hw_pad != HW:
            # Zero padding: padded positions never match a valid index, and zeros keep
            # NaN-free lanes out of the matmul.
            reg_all = jnp.pad(reg_all, ((0, 0), (0, 0), (0, hw_pad - HW)))
    else:
        chunk = HW                                   # single full-extent block
        hw_pad = HW
    n_chunks = hw_pad // chunk

    ind3 = ind.reshape(B, 1, K).astype(jnp.int32)    # lane-dense K
    mask3 = reg_mask.reshape(B, 1, K)
    tgt_ck = jnp.transpose(reg_target, (0, 2, 1))    # (B, C, K), tiny host transpose

    bytes_in = int(reg_all.size * reg_all.dtype.itemsize
                   + ind3.size * 4
                   + mask3.size * mask3.dtype.itemsize
                   + tgt_ck.size * tgt_ck.dtype.itemsize)
    cost = pl.CostEstimate(flops=2 * B * SC * hw_pad * K + 2 * B * hw_pad * K,
                           transcendentals=0,
                           bytes_accessed=bytes_in)

    out = pl.pallas_call(
        _make_reg_l1_kernel(num_stacks, C, chunk),
        out_shape=jax.ShapeDtypeStruct((num_stacks,), jnp.float32),
        grid=(n_chunks,),
        in_specs=[
            pl.BlockSpec((B, 1, K), lambda j: (0, 0, 0)),
            pl.BlockSpec((B, 1, K), lambda j: (0, 0, 0)),
            pl.BlockSpec((B, C, K), lambda j: (0, 0, 0)),
            pl.BlockSpec((B, SC, chunk), lambda j: (0, 0, j)),
        ],
        out_specs=pl.BlockSpec((num_stacks,), lambda j: (0,),
                               memory_space=pltpu.MemorySpace.SMEM),
        scratch_shapes=[pltpu.VMEM((B, SC, K), jnp.float32)],
        compiler_params=pltpu.CompilerParams(
            dimension_semantics=("arbitrary",),
            vmem_limit_bytes=32 * 1024 * 1024),
        cost_estimate=cost,
    )(ind3, mask3, tgt_ck, reg_all)
    return out
    # TODO(synk): out-of-range `ind` (>= H*W) silently gathers 0 here, whereas torch.gather
    # would raise; documented behavioral difference only.


# --------------------------------------------------------------------------------------
# CombineLoss forward
# --------------------------------------------------------------------------------------
def combine_loss(outputs, batch, config):
    num_stacks = config["train"]["num_stacks"]
    # Fused across stacks: one focal launch + one reg-L1 launch total.
    hm_losses = focal_loss_multi([outputs[s]["hm"] for s in range(num_stacks)],
                                 batch["hm"])                           # (S,)
    off_losses = reg_l1_loss_multi([outputs[s]["reg"] for s in range(num_stacks)],
                                   batch["reg_mask"], batch["ind"], batch["reg"])  # (S,)
    hm_loss = jnp.sum(hm_losses) / num_stacks
    off_loss = jnp.sum(off_losses) / num_stacks
    loss = config["train"]["hm_weight"] * hm_loss + config["train"]["off_weight"] * off_loss
    loss_stats = {"loss": loss, "hm_loss": hm_loss, "off_loss": off_loss}
    return loss, loss_stats


if __name__ == "__main__":
    key = jax.random.PRNGKey(0)
    B, C, H, W, K = 2, 4, 16, 16, 8
    num_stacks = 2
    config = {
        "train": {
            "num_stacks": num_stacks,
            "hm_weight": 1.0,
            "off_weight": 1.0,
            "reg_loss": "l1",
        }
    }

    keys = jax.random.split(key, 8)

    # ground-truth heatmap in [0, 1) with a few exact-1.0 positives
    gt_hm = jax.random.uniform(keys[0], (B, C, H, W), dtype=jnp.float32) * 0.9
    gt_hm = gt_hm.at[:, :, 4, 4].set(1.0)
    gt_hm = gt_hm.at[:, :, 10, 7].set(1.0)

    ind = jnp.array(
        [[4 * W + 4, 10 * W + 7, 0, 0, 0, 0, 0, 0],
         [4 * W + 4, 10 * W + 7, 3, 0, 0, 0, 0, 0]],
        dtype=jnp.int32,
    )
    reg_mask = jnp.array(
        [[1, 1, 0, 0, 0, 0, 0, 0],
         [1, 1, 1, 0, 0, 0, 0, 0]],
        dtype=jnp.float32,
    )
    reg_target = jax.random.uniform(keys[1], (B, K, 2), dtype=jnp.float32)

    outputs = []
    for s in range(num_stacks):
        hm_logits = jax.random.normal(keys[2 + s], (B, C, H, W), dtype=jnp.float32)
        reg_out = jax.random.normal(keys[4 + s], (B, 2, H, W), dtype=jnp.float32) * 0.1
        outputs.append({"hm": hm_logits, "reg": reg_out})

    batch = {"hm": gt_hm, "reg_mask": reg_mask, "ind": ind, "reg": reg_target}

    loss, stats = combine_loss(outputs, batch, config)
    jax.block_until_ready(loss)
    print("KERNEL_OK")
</pallas_src>

<mosaic_0001>
module attributes {stable_mosaic.version = 11 : i64} {
  func.func @kernel(%arg0: i32, %arg1: i32, %arg2: memref<16x128xf32, #tpu.memory_space<vmem>>, %arg3: memref<16x128xf32, #tpu.memory_space<vmem>>, %arg4: memref<16x128xf32, #tpu.memory_space<vmem>>, %arg5: memref<1x1x3xf32, #tpu.memory_space<smem>>, %arg6: memref<3x16x128xf32, #tpu.memory_space<vmem>>) attributes {dimension_semantics = [#tpu.dimension_semantics<parallel>, #tpu.dimension_semantics<arbitrary>], iteration_bounds = array<i64: 2, 1>, scalar_prefetch = 0 : i64, scratch_operands = 1 : i64, tpu.core_type = #tpu.core_type<tc>, window_params = [{transform_indices = @transform_0, window_bounds = array<i64: 16, 128>}, {transform_indices = @transform_1, window_bounds = array<i64: 16, 128>}, {transform_indices = @transform_2, window_bounds = array<i64: 16, 128>}, {transform_indices = @transform_3, window_bounds = array<i64: 1, 1, 3>}]} {
    %c0_i32 = arith.constant 0 : i32
    %0 = arith.cmpi eq, %arg1, %c0_i32 : i32
    %1 = arith.extui %0 : i1 to i32
    %c0_i32_0 = arith.constant 0 : i32
    %2 = arith.cmpi ne, %1, %c0_i32_0 : i32
    scf.if %2 {
      %cst_57 = arith.constant 0.000000e+00 : f32
      %124 = vector.broadcast %cst_57 : f32 to vector<3x16x128xf32>
      %c0_58 = arith.constant 0 : index
      %c0_59 = arith.constant 0 : index
      %c0_60 = arith.constant 0 : index
      %125 = vector.load %arg6[%c0_58, %c0_59, %c0_60] : memref<3x16x128xf32, #tpu.memory_space<vmem>>, vector<3x16x128xf32>
      tpu.vector_store %arg6[%c0_58, %c0_59, %c0_60], %124 {strides = array<i32>} : memref<3x16x128xf32, #tpu.memory_space<vmem>>, vector<3x16x128xf32>,
    } else {
    }
    %c0 = arith.constant 0 : index
    %c0_1 = arith.constant 0 : index
    %3 = vector.load %arg2[%c0, %c0_1] : memref<16x128xf32, #tpu.memory_space<vmem>>, vector<16x128xf32>
    %cst = arith.constant 1.000000e+00 : f32
    %4 = vector.broadcast %cst : f32 to vector<16x128xf32>
    %5 = arith.cmpf oeq, %3, %4 : vector<16x128xf32>
    %cst_2 = arith.constant 1.000000e+00 : f32
    %6 = vector.broadcast %cst_2 : f32 to vector<16x128xf32>
    %7 = arith.cmpf olt, %3, %6 : vector<16x128xf32>
    %c1_i32 = arith.constant 1 : i32
    %8 = arith.muli %arg0, %c1_i32 : i32
    %9 = arith.addi %8, %arg1 : i32
    %c16_i32 = arith.constant 16 : i32
    %10 = arith.muli %9, %c16_i32 : i32
    %11 = tpu.iota {dimensions = array<i32: 0>} : vector<16x1xi32>
    %12 = vector.broadcast %10 : i32 to vector<16x1xi32>
    %13 = arith.addi %11, %12 : vector<16x1xi32>
    %c16_i32_3 = arith.constant 16 : i32
    %14 = vector.broadcast %c16_i32_3 : i32 to vector<16x1xi32>
    %15 = arith.cmpi slt, %13, %14 : vector<16x1xi32>
    %16 = vector.broadcast %15 : vector<16x1xi1> to vector<16x128xi1>
    %17 = arith.andi %5, %16 : vector<16x128xi1>
    %18 = vector.broadcast %15 : vector<16x1xi1> to vector<16x128xi1>
    %19 = arith.andi %7, %18 : vector<16x128xi1>
    %cst_4 = arith.constant 1.000000e+00 : f32
    %20 = vector.broadcast %cst_4 : f32 to vector<16x128xf32>
    %21 = arith.subf %20, %3 : vector<16x128xf32>
    %22 = arith.mulf %21, %21 : vector<16x128xf32>
    %23 = arith.mulf %22, %22 : vector<16x128xf32>
    %c2 = arith.constant 2 : index
    %c0_5 = arith.constant 0 : index
    %c0_6 = arith.constant 0 : index
    %24 = vector.load %arg6[%c2, %c0_5, %c0_6] : memref<3x16x128xf32, #tpu.memory_space<vmem>>, vector<1x16x128xf32>
    %25 = vector.shape_cast %24 : vector<1x16x128xf32> to vector<16x128xf32>
    %cst_7 = arith.constant 1.000000e+00 : f32
    %cst_8 = arith.constant 0.000000e+00 : f32
    %26 = vector.broadcast %cst_7 : f32 to vector<16x128xf32>
    %27 = vector.broadcast %cst_8 : f32 to vector<16x128xf32>
    %28 = arith.select %17, %26, %27 : vector<16x128xi1>, vector<16x128xf32>
    %29 = arith.addf %25, %28 : vector<16x128xf32>
    %c2_9 = arith.constant 2 : index
    %c0_10 = arith.constant 0 : index
    %c0_11 = arith.constant 0 : index
    %30 = vector.load %arg6[%c2_9, %c0_10, %c0_11] : memref<3x16x128xf32, #tpu.memory_space<vmem>>, vector<1x16x128xf32>
    %31 = vector.shape_cast %30 : vector<1x16x128xf32> to vector<16x128xf32>
    %32 = vector.shape_cast %29 : vector<16x128xf32> to vector<1x16x128xf32>
    tpu.vector_store %arg6[%c2_9, %c0_10, %c0_11], %32 {strides = array<i32>} : memref<3x16x128xf32, #tpu.memory_space<vmem>>, vector<1x16x128xf32>,
    %c0_12 = arith.constant 0 : index
    %c0_13 = arith.constant 0 : index
    %33 = vector.load %arg3[%c0_12, %c0_13] : memref<16x128xf32, #tpu.memory_space<vmem>>, vector<16x128xf32>
    %cst_14 = arith.constant 0.000000e+00 : f32
    %34 = vector.broadcast %cst_14 : f32 to vector<16x128xf32>
    %35 = arith.subf %34, %33 : vector<16x128xf32>
    %36 = math.exp %35 : vector<16x128xf32>
    %cst_15 = arith.constant 1.000000e+00 : f32
    %37 = vector.broadcast %cst_15 : f32 to vector<16x128xf32>
    %38 = arith.addf %37, %36 : vector<16x128xf32>
    %cst_16 = arith.constant 1.000000e+00 : f32
    %39 = vector.broadcast %cst_16 : f32 to vector<16x128xf32>
    %40 = arith.divf %39, %38 : vector<16x128xf32>
    %cst_17 = arith.constant 9.99999974E-5 : f32
    %cst_18 = arith.constant 0.999899983 : f32
    %41 = vector.broadcast %cst_17 : f32 to vector<16x128xf32>
    %42 = arith.maximumf %41, %40 : vector<16x128xf32>
    %43 = vector.broadcast %cst_18 : f32 to vector<16x128xf32>
    %44 = arith.minimumf %43, %42 : vector<16x128xf32>
    %45 = math.log %40 : vector<16x128xf32>
    %cst_19 = arith.constant 9.99999974E-5 : f32
    %46 = vector.broadcast %cst_19 : f32 to vector<16x128xf32>
    %47 = arith.cmpf olt, %40, %46 : vector<16x128xf32>
    %cst_20 = arith.constant 0.999899983 : f32
    %48 = vector.broadcast %cst_20 : f32 to vector<16x128xf32>
    %49 = arith.cmpf ogt, %40, %48 : vector<16x128xf32>
    %cst_21 = arith.constant -1.000050e-04 : f32
    %50 = vector.broadcast %cst_21 : f32 to vector<16x128xf32>
    %51 = arith.select %49, %50, %45 : vector<16x128xi1>, vector<16x128xf32>
    %cst_22 = arith.constant -9.21034049 : f32
    %52 = vector.broadcast %cst_22 : f32 to vector<16x128xf32>
    %53 = arith.select %47, %52, %51 : vector<16x128xi1>, vector<16x128xf32>
    %54 = arith.subf %45, %33 : vector<16x128xf32>
    %cst_23 = arith.constant -1.000050e-04 : f32
    %55 = vector.broadcast %cst_23 : f32 to vector<16x128xf32>
    %56 = arith.select %47, %55, %54 : vector<16x128xi1>, vector<16x128xf32>
    %cst_24 = arith.constant -9.21034049 : f32
    %57 = vector.broadcast %cst_24 : f32 to vector<16x128xf32>
    %58 = arith.select %49, %57, %56 : vector<16x128xi1>, vector<16x128xf32>
    %cst_25 = arith.constant 1.000000e+00 : f32
    %59 = vector.broadcast %cst_25 : f32 to vector<16x128xf32>
    %60 = arith.subf %59, %44 : vector<16x128xf32>
    %61 = arith.mulf %60, %60 : vector<16x128xf32>
    %62 = arith.mulf %53, %61 : vector<16x128xf32>
    %63 = arith.mulf %44, %44 : vector<16x128xf32>
    %64 = arith.mulf %58, %63 : vector<16x128xf32>
    %65 = arith.mulf %64, %23 : vector<16x128xf32>
    %c0_26 = arith.constant 0 : index
    %c0_27 = arith.constant 0 : index
    %c0_28 = arith.constant 0 : index
    %66 = vector.load %arg6[%c0_26, %c0_27, %c0_28] : memref<3x16x128xf32, #tpu.memory_space<vmem>>, vector<1x16x128xf32>
    %67 = vector.shape_cast %66 : vector<1x16x128xf32> to vector<16x128xf32>
    %cst_29 = arith.constant 0.000000e+00 : f32
    %68 = vector.broadcast %cst_29 : f32 to vector<16x128xf32>
    %69 = arith.select %17, %62, %68 : vector<16x128xi1>, vector<16x128xf32>
    %cst_30 = arith.constant 0.000000e+00 : f32
    %70 = vector.broadcast %cst_30 : f32 to vector<16x128xf32>
    %71 = arith.select %19, %65, %70 : vector<16x128xi1>, vector<16x128xf32>
    %72 = arith.addf %69, %71 : vector<16x128xf32>
    %73 = arith.addf %67, %72 : vector<16x128xf32>
    %c0_31 = arith.constant 0 : index
    %c0_32 = arith.constant 0 : index
    %c0_33 = arith.constant 0 : index
    %74 = vector.load %arg6[%c0_31, %c0_32, %c0_33] : memref<3x16x128xf32, #tpu.memory_space<vmem>>, vector<1x16x128xf32>
    %75 = vector.shape_cast %74 : vector<1x16x128xf32> to vector<16x128xf32>
    %76 = vector.shape_cast %73 : vector<16x128xf32> to vector<1x16x128xf32>
    tpu.vector_store %arg6[%c0_31, %c0_32, %c0_33], %76 {strides = array<i32>} : memref<3x16x128xf32, #tpu.memory_space<vmem>>, vector<1x16x128xf32>,
    %c0_34 = arith.constant 0 : index
    %c0_35 = arith.constant 0 : index
    %77 = vector.load %arg4[%c0_34, %c0_35] : memref<16x128xf32, #tpu.memory_space<vmem>>, vector<16x128xf32>
    %cst_36 = arith.constant 0.000000e+00 : f32
    %78 = vector.broadcast %cst_36 : f32 to vector<16x128xf32>
    %79 = arith.subf %78, %77 : vector<16x128xf32>
    %80 = math.exp %79 : vector<16x128xf32>
    %cst_37 = arith.constant 1.000000e+00 : f32
    %81 = vector.broadcast %cst_37 : f32 to vector<16x128xf32>
    %82 = arith.addf %81, %80 : vector<16x128xf32>
    %cst_38 = arith.constant 1.000000e+00 : f32
    %83 = vector.broadcast %cst_38 : f32 to vector<16x128xf32>
    %84 = arith.divf %83, %82 : vector<16x128xf32>
    %cst_39 = arith.constant 9.99999974E-5 : f32
    %cst_40 = arith.constant 0.999899983 : f32
    %85 = vector.broadcast %cst_39 : f32 to vector<16x128xf32>
    %86 = arith.maximumf %85, %84 : vector<16x128xf32>
    %87 = vector.broadcast %cst_40 : f32 to vector<16x128xf32>
    %88 = arith.minimumf %87, %86 : vector<16x128xf32>
    %89 = math.log %84 : vector<16x128xf32>
    %cst_41 = arith.constant 9.99999974E-5 : f32
    %90 = vector.broadcast %cst_41 : f32 to vector<16x128xf32>
    %91 = arith.cmpf olt, %84, %90 : vector<16x128xf32>
    %cst_42 = arith.constant 0.999899983 : f32
    %92 = vector.broadcast %cst_42 : f32 to vector<16x128xf32>
    %93 = arith.cmpf ogt, %84, %92 : vector<16x128xf32>
    %cst_43 = arith.constant -1.000050e-04 : f32
    %94 = vector.broadcast %cst_43 : f32 to vector<16x128xf32>
    %95 = arith.select %93, %94, %89 : vector<16x128xi1>, vector<16x128xf32>
    %cst_44 = arith.constant -9.21034049 : f32
    %96 = vector.broadcast %cst_44 : f32 to vector<16x128xf32>
    %97 = arith.select %91, %96, %95 : vector<16x128xi1>, vector<16x128xf32>
    %98 = arith.subf %89, %77 : vector<16x128xf32>
    %cst_45 = arith.constant -1.000050e-04 : f32
    %99 = vector.broadcast %cst_45 : f32 to vector<16x128xf32>
    %100 = arith.select %91, %99, %98 : vector<16x128xi1>, vector<16x128xf32>
    %cst_46 = arith.constant -9.21034049 : f32
    %101 = vector.broadcast %cst_46 : f32 to vector<16x128xf32>
    %102 = arith.select %93, %101, %100 : vector<16x128xi1>, vector<16x128xf32>
    %cst_47 = arith.constant 1.000000e+00 : f32
    %103 = vector.broadcast %cst_47 : f32 to vector<16x128xf32>
    %104 = arith.subf %103, %88 : vector<16x128xf32>
    %105 = arith.mulf %104, %104 : vector<16x128xf32>
    %106 = arith.mulf %97, %105 : vector<16x128xf32>
    %107 = arith.mulf %88, %88 : vector<16x128xf32>
    %108 = arith.mulf %102, %107 : vector<16x128xf32>
    %109 = arith.mulf %108, %23 : vector<16x128xf32>
    %c1 = arith.constant 1 : index
    %c0_48 = arith.constant 0 : index
    %c0_49 = arith.constant 0 : index
    %110 = vector.load %arg6[%c1, %c0_48, %c0_49] : memref<3x16x128xf32, #tpu.memory_space<vmem>>, vector<1x16x128xf32>
    %111 = vector.shape_cast %110 : vector<1x16x128xf32> to vector<16x128xf32>
    %cst_50 = arith.constant 0.000000e+00 : f32
    %112 = vector.broadcast %cst_50 : f32 to vector<16x128xf32>
    %113 = arith.select %17, %106, %112 : vector<16x128xi1>, vector<16x128xf32>
    %cst_51 = arith.constant 0.000000e+00 : f32
    %114 = vector.broadcast %cst_51 : f32 to vector<16x128xf32>
    %115 = arith.select %19, %109, %114 : vector<16x128xi1>, vector<16x128xf32>
    %116 = arith.addf %113, %115 : vector<16x128xf32>
    %117 = arith.addf %111, %116 : vector<16x128xf32>
    %c1_52 = arith.constant 1 : index
    %c0_53 = arith.constant 0 : index
    %c0_54 = arith.constant 0 : index
    %118 = vector.load %arg6[%c1_52, %c0_53, %c0_54] : memref<3x16x128xf32, #tpu.memory_space<vmem>>, vector<1x16x128xf32>
    %119 = vector.shape_cast %118 : vector<1x16x128xf32> to vector<16x128xf32>
    %120 = vector.shape_cast %117 : vector<16x128xf32> to vector<1x16x128xf32>
    tpu.vector_store %arg6[%c1_52, %c0_53, %c0_54], %120 {strides = array<i32>} : memref<3x16x128xf32, #tpu.memory_space<vmem>>, vector<1x16x128xf32>,
    %c0_i32_55 = arith.constant 0 : i32
    %121 = arith.cmpi eq, %arg1, %c0_i32_55 : i32
    %122 = arith.extui %121 : i1 to i32
    %c0_i32_56 = arith.constant 0 : i32
    %123 = arith.cmpi ne, %122, %c0_i32_56 : i32
    scf.if %123 {
      %c0_57 = arith.constant 0 : index
      %c0_58 = arith.constant 0 : index
      %c0_59 = arith.constant 0 : index
      %124 = vector.load %arg6[%c0_57, %c0_58, %c0_59] : memref<3x16x128xf32, #tpu.memory_space<vmem>>, vector<1x16x128xf32>
      %125 = vector.shape_cast %124 : vector<1x16x128xf32> to vector<16x128xf32>
      %126 = vector.shape_cast %125 : vector<16x128xf32> to vector<1x16x128xf32>
      %cst_60 = arith.constant dense<0.000000e+00> : vector<1xf32>
      %127 = vector.multi_reduction <add>, %126, %cst_60 [1, 2] : vector<1x16x128xf32> to vector<1xf32>
      %128 = vector.shape_cast %127 : vector<1xf32> to vector<1x1x1xf32>
      %129 = vector.extract %128[0, 0, 0] : f32 from vector<1x1x1xf32>
      %c0_61 = arith.constant 0 : index
      %c0_62 = arith.constant 0 : index
      %c0_63 = arith.constant 0 : index
      %130 = memref.load %arg5[%c0_61, %c0_62, %c0_63] : memref<1x1x3xf32, #tpu.memory_space<smem>>
      memref.store %129, %arg5[%c0_61, %c0_62, %c0_63] : memref<1x1x3xf32, #tpu.memory_space<smem>>
      %c1_64 = arith.constant 1 : index
      %c0_65 = arith.constant 0 : index
      %c0_66 = arith.constant 0 : index
      %131 = vector.load %arg6[%c1_64, %c0_65, %c0_66] : memref<3x16x128xf32, #tpu.memory_space<vmem>>, vector<1x16x128xf32>
      %132 = vector.shape_cast %131 : vector<1x16x128xf32> to vector<16x128xf32>
      %133 = vector.shape_cast %132 : vector<16x128xf32> to vector<1x16x128xf32>
      %cst_67 = arith.constant dense<0.000000e+00> : vector<1xf32>
      %134 = vector.multi_reduction <add>, %133, %cst_67 [1, 2] : vector<1x16x128xf32> to vector<1xf32>
      %135 = vector.shape_cast %134 : vector<1xf32> to vector<1x1x1xf32>
      %136 = vector.extract %135[0, 0, 0] : f32 from vector<1x1x1xf32>
      %c0_68 = arith.constant 0 : index
      %c0_69 = arith.constant 0 : index
      %c1_70 = arith.constant 1 : index
      %137 = memref.load %arg5[%c0_68, %c0_69, %c1_70] : memref<1x1x3xf32, #tpu.memory_space<smem>>
      memref.store %136, %arg5[%c0_68, %c0_69, %c1_70] : memref<1x1x3xf32, #tpu.memory_space<smem>>
      %c2_71 = arith.constant 2 : index
      %c0_72 = arith.constant 0 : index
      %c0_73 = arith.constant 0 : index
      %138 = vector.load %arg6[%c2_71, %c0_72, %c0_73] : memref<3x16x128xf32, #tpu.memory_space<vmem>>, vector<1x16x128xf32>
      %139 = vector.shape_cast %138 : vector<1x16x128xf32> to vector<16x128xf32>
      %140 = vector.shape_cast %139 : vector<16x128xf32> to vector<1x16x128xf32>
      %cst_74 = arith.constant dense<0.000000e+00> : vector<1xf32>
      %141 = vector.multi_reduction <add>, %140, %cst_74 [1, 2] : vector<1x16x128xf32> to vector<1xf32>
      %142 = vector.shape_cast %141 : vector<1xf32> to vector<1x1x1xf32>
      %143 = vector.extract %142[0, 0, 0] : f32 from vector<1x1x1xf32>
      %c0_75 = arith.constant 0 : index
      %c0_76 = arith.constant 0 : index
      %c2_77 = arith.constant 2 : index
      %144 = memref.load %arg5[%c0_75, %c0_76, %c2_77] : memref<1x1x3xf32, #tpu.memory_space<smem>>
      memref.store %143, %arg5[%c0_75, %c0_76, %c2_77] : memref<1x1x3xf32, #tpu.memory_space<smem>>
    } else {
    }
    return
  }
  func.func @transform_0(%arg0: i32, %arg1: i32) -> (i32, i32) {
    %c1_i32 = arith.constant 1 : i32
    %0 = arith.muli %arg0, %c1_i32 : i32
    %1 = arith.addi %0, %arg1 : i32
    %c0_i32 = arith.constant 0 : i32
    %2 = arith.minsi %1, %c0_i32 : i32
    %c0_i32_0 = arith.constant 0 : i32
    %c0_i32_1 = arith.constant 0 : i32
    return %2, %c0_i32_0 : i32, i32
  }
  func.func @transform_1(%arg0: i32, %arg1: i32) -> (i32, i32) {
    %c1_i32 = arith.constant 1 : i32
    %0 = arith.muli %arg0, %c1_i32 : i32
    %1 = arith.addi %0, %arg1 : i32
    %c0_i32 = arith.constant 0 : i32
    %2 = arith.minsi %1, %c0_i32 : i32
    %c0_i32_0 = arith.constant 0 : i32
    %c0_i32_1 = arith.constant 0 : i32
    return %2, %c0_i32_0 : i32, i32
  }
  func.func @transform_2(%arg0: i32, %arg1: i32) -> (i32, i32) {
    %c1_i32 = arith.constant 1 : i32
    %0 = arith.muli %arg0, %c1_i32 : i32
    %1 = arith.addi %0, %arg1 : i32
    %c0_i32 = arith.constant 0 : i32
    %2 = arith.minsi %1, %c0_i32 : i32
    %c0_i32_0 = arith.constant 0 : i32
    %c0_i32_1 = arith.constant 0 : i32
    return %2, %c0_i32_0 : i32, i32
  }
  func.func @transform_3(%arg0: i32, %arg1: i32) -> (i32, i32, i32) {
    %c0_i32 = arith.constant 0 : i32
    %c0_i32_0 = arith.constant 0 : i32
    %c0_i32_1 = arith.constant 0 : i32
    return %arg0, %c0_i32, %c0_i32_0 : i32, i32, i32
  }
}

</mosaic_0001>

<llo_original>
// kernel: tpu_custom_call.1
$region0: #{tpu_custom_call.1}
  #allocation0 [shape = 'u32[]', space=smem, size = 0x4, offset = 0x4, fixed_abs, tag = 'smem constant byte address 0x4 - core index']
  #allocation1 [shape = 'u32[144,128]{1,0:T(1,128)}', space=vmem, size = 0x12000, scoped, tag = 'internal scratch']
  #allocation2 [shape = 'f32[3,16,128]{2,1,0:T(8,128)}', space=vmem, size = 0x6000, scoped, tag = 'scratch operand']
  %s0 = inlined_call_operand.hbm [shape: f32[16,128], index: 0, kind: input, shape index: {}]
  %s1 = inlined_call_operand.hbm [shape: f32[16,128], index: 1, kind: input, shape index: {}]
  %s2 = inlined_call_operand.hbm [shape: f32[16,128], index: 2, kind: input, shape index: {}]
  %s3 = inlined_call_operand.hbm [shape: f32[2,1,3], index: 3, kind: output, shape index: {}]
  %s4 = sld [smem:[#allocation0]]
  $region65: #{tpu_custom_call.1} parent=0
    _
  %s6 = ssub.s32 1, %s4
  %s7 = scalar_select 0, %s6, %s4
  $region1: #{tpu_custom_call.1} parent=0
    #allocation3 [shape = 'u8[16384]{0}', space=vmem, size = 0x4000, scoped, tag = 'input window, operand 0']
    #allocation4 [shape = 's32[2]{0}', space=sflag, size = 0x8, scoped, tag = 'scoped memory for tpu_custom_call.1']
    #allocation5 [shape = 's32[2]{0}', space=sflag, size = 0x8, scoped, tag = 'scoped memory for tpu_custom_call.1']
    #allocation6 [shape = 'u8[16384]{0}', space=vmem, size = 0x4000, scoped, tag = 'input window, operand 1']
    #allocation7 [shape = 's32[2]{0}', space=sflag, size = 0x8, scoped, tag = 'scoped memory for tpu_custom_call.1']
    #allocation8 [shape = 'u8[16384]{0}', space=vmem, size = 0x4000, scoped, tag = 'input window, operand 2']
    #allocation9 [shape = 'u8[1024]{0}', space=smem, size = 0x400, scoped, tag = 'output window, operand 0']
    %8 = vsyncpa [#allocation4], 0
    %s9 = scalar_lea.sflag [#allocation4], 1
    %10 = vsyncpa %s9, 0
    %11 = vsyncpa [#allocation7], 0
    %s12 = scalar_lea.sflag [#allocation7], 1
    %13 = vsyncpa %s12, 0
    %14 = vsyncpa [#allocation5], 0
    %s15 = scalar_lea.sflag [#allocation5], 1
    %16 = vsyncpa %s15, 0
    loop: start=0, step=1, limit=4
    $region2: #{tpu_custom_call.1} parent=1 // loop_pre_header
      _
    $region3: #{tpu_custom_call.1} parent=1 // loop_header
      %s18 = sphi 0, %s22
      %p19 = scmp.ge.s32.totalorder %s18, 4
      %s25 = sphi 0, %s37
      %s26 = sphi 0, %s33
      %s27 = sphi 0, %s25
      %s28 = sphi 0, %s26
      %s29 = sphi 0, %s27
      %s30 = sphi 0, %s28
      %s46 = sphi 0, %s48
      %s49 = sphi 0, %s46
      %s50 = sphi 0, %s49
      %s66 = sphi 0, %s50
      %s78 = sphi 0, %s80
      %s81 = sphi 0, %s78
      %s82 = sphi 0, %s81
      %s98 = sphi 0, %s82
      %s110 = sphi 0, %s112
      %s113 = sphi 0, %s110
      %s114 = sphi 0, %s113
      %s130 = sphi 0, %s114
      %s136 = sphi 0, %s138
      %s139 = sphi 0, %s136
      %s140 = sphi 0, %s139
      %s156 = sphi 0, %s140
    $region4: #{tpu_custom_call.1} parent=1 // loop_header_branch
      %21 = sbr.rel (%p19) target = $region8
    $region5: #{tpu_custom_call.1} parent=1 // loop_body
      %s23 = ssub.s32 %s18, 1
      %s24 = ssub.s32 %s18, 2
      %s31 = sadd.s32 1, %s26
      %p32 = scmp.ge.s32.totalorder %s31, 1
      %s33 = scalar_select %p32, 0, %s31
      %s34 = sadd.s32 1, %s25
      %s35 = scalar_select %p32, %s34, %s25
      %p36 = scmp.ge.s32.totalorder %s35, 2
      %s37 = scalar_select %p36, 0, %s35
      %s38 = sadd.s32 %s25, %s26
      %p39 = scmp.lt.s32.totalorder %s38, 0
      %s40 = scalar_select %p39, %s38, 0
      %s41 = sadd.s32 %s37, %s33
      %p42 = scmp.lt.s32.totalorder %s41, 0
      %s43 = scalar_select %p42, %s41, 0
      %s44 = ssub.s32 %s40, %s43
      %p45 = scmp.eq.s32.totalorder %s44, 0
      %s47 = sadd.s32 %s46, 1
      %s48 = scalar_select %p45, %s46, %s47
      %p51 = pneg %p45
      %p52 = scmp.eq.s32.totalorder %s18, 1
      %p53 = por %p51, %p52
      %p54 = scmp.ne.s32.totalorder %s46, %s49
      %p55 = scmp.eq.s32.totalorder %s18, 0
      %p56 = por %p54, %p55
      %p57 = scmp.ne.s32.totalorder %s46, %s49
      %p58 = scmp.eq.s32.totalorder %s23, 1
      %p59 = por %p57, %p58
      %p60 = scmp.ne.s32.totalorder %s49, %s50
      %p61 = scmp.eq.s32.totalorder %s23, 0
      %p62 = por %p60, %p61
      %p63 = scmp.ne.s32.totalorder %s49, %s50
      %p64 = scmp.eq.s32.totalorder %s24, 1
      %p65 = por %p63, %p64
      %p67 = scmp.ne.s32.totalorder %s50, %s66
      %p68 = scmp.eq.s32.totalorder %s24, 0
      %p69 = por %p67, %p68
      %s70 = sadd.s32 %s25, %s26
      %p71 = scmp.lt.s32.totalorder %s70, 0
      %s72 = scalar_select %p71, %s70, 0
      %s73 = sadd.s32 %s37, %s33
      %p74 = scmp.lt.s32.totalorder %s73, 0
      %s75 = scalar_select %p74, %s73, 0
      %s76 = ssub.s32 %s72, %s75
      %p77 = scmp.eq.s32.totalorder %s76, 0
      %s79 = sadd.s32 %s78, 1
      %s80 = scalar_select %p77, %s78, %s79
      %p83 = pneg %p77
      %p84 = scmp.eq.s32.totalorder %s18, 1
      %p85 = por %p83, %p84
      %p86 = scmp.ne.s32.totalorder %s78, %s81
      %p87 = scmp.eq.s32.totalorder %s18, 0
      %p88 = por %p86, %p87
      %p89 = scmp.ne.s32.totalorder %s78, %s81
      %p90 = scmp.eq.s32.totalorder %s23, 1
      %p91 = por %p89, %p90
      %p92 = scmp.ne.s32.totalorder %s81, %s82
      %p93 = scmp.eq.s32.totalorder %s23, 0
      %p94 = por %p92, %p93
      %p95 = scmp.ne.s32.totalorder %s81, %s82
      %p96 = scmp.eq.s32.totalorder %s24, 1
      %p97 = por %p95, %p96
      %p99 = scmp.ne.s32.totalorder %s82, %s98
      %p100 = scmp.eq.s32.totalorder %s24, 0
      %p101 = por %p99, %p100
      %s102 = sadd.s32 %s25, %s26
      %p103 = scmp.lt.s32.totalorder %s102, 0
      %s104 = scalar_select %p103, %s102, 0
      %s105 = sadd.s32 %s37, %s33
      %p106 = scmp.lt.s32.totalorder %s105, 0
      %s107 = scalar_select %p106, %s105, 0
      %s108 = ssub.s32 %s104, %s107
      %p109 = scmp.eq.s32.totalorder %s108, 0
      %s111 = sadd.s32 %s110, 1
      %s112 = scalar_select %p109, %s110, %s111
      %p115 = pneg %p109
      %p116 = scmp.eq.s32.totalorder %s18, 1
      %p117 = por %p115, %p116
      %p118 = scmp.ne.s32.totalorder %s110, %s113
      %p119 = scmp.eq.s32.totalorder %s18, 0
      %p120 = por %p118, %p119
      %p121 = scmp.ne.s32.totalorder %s110, %s113
      %p122 = scmp.eq.s32.totalorder %s23, 1
      %p123 = por %p121, %p122
      %p124 = scmp.ne.s32.totalorder %s113, %s114
      %p125 = scmp.eq.s32.totalorder %s23, 0
      %p126 = por %p124, %p125
      %p127 = scmp.ne.s32.totalorder %s113, %s114
      %p128 = scmp.eq.s32.totalorder %s24, 1
      %p129 = por %p127, %p128
      %p131 = scmp.ne.s32.totalorder %s114, %s130
      %p132 = scmp.eq.s32.totalorder %s24, 0
      %p133 = por %p131, %p132
      %s134 = ssub.s32 %s25, %s37
      %p135 = scmp.eq.s32.totalorder %s134, 0
      %s137 = sadd.s32 %s136, 1
      %s138 = scalar_select %p135, %s136, %s137
      %p141 = pneg %p135
      %p142 = scmp.eq.s32.totalorder %s18, 1
      %p143 = por %p141, %p142
      %p144 = scmp.ne.s32.totalorder %s136, %s139
      %p145 = scmp.eq.s32.totalorder %s18, 0
      %p146 = por %p144, %p145
      %p147 = scmp.ne.s32.totalorder %s136, %s139
      %p148 = scmp.eq.s32.totalorder %s23, 1
      %p149 = por %p147, %p148
      %p150 = scmp.ne.s32.totalorder %s139, %s140
      %p151 = scmp.eq.s32.totalorder %s23, 0
      %p152 = por %p150, %p151
      %p153 = scmp.ne.s32.totalorder %s139, %s140
      %p154 = scmp.eq.s32.totalorder %s24, 1
      %p155 = por %p153, %p154
      %p157 = scmp.ne.s32.totalorder %s140, %s156
      %p158 = scmp.eq.s32.totalorder %s24, 0
      %p159 = por %p157, %p158
      %p160 = scmp.le.s32.totalorder 1, %s18
      %p161 = scmp.lt.s32.totalorder %s18, 3
      %p162 = pnand %p160, %p161
      %p163 = pneg %p162
      // Predicated region
      $region9: #{tpu_custom_call.1} parent=5 // pred_check
        _
      $region10: #{tpu_custom_call.1} parent=5 // pred_check_branch
        %165 = sbr.rel (%p162) target = $region12
      $region11: #{tpu_custom_call.1} parent=5 // pred_region
        %s166 = ssub.s32 %s18, 1
      $region12: #{tpu_custom_call.1} parent=5 // pred_fallthru
        _
      %p167 = scmp.lt.s32.totalorder %s18, 2
      // Predicated region
      $region13: #{tpu_custom_call.1} parent=5 // pred_check
        %p168 = pneg %p167
      $region14: #{tpu_custom_call.1} parent=5 // pred_check_branch
        %170 = sbr.rel (%p168) target = $region16
      $region15: #{tpu_custom_call.1} parent=5 // pred_region
        // Predicated region
        $region17: #{tpu_custom_call.1} parent=15 // pred_check
          %p171 = pneg %p56
        $region18: #{tpu_custom_call.1} parent=15 // pred_check_branch
          %173 = sbr.rel (%p171) target = $region20
        $region19: #{tpu_custom_call.1} parent=15 // pred_region
          %s174 = sand.u32 %s46, 1
          %s175 = scalar_lea.sflag [#allocation4], %s174
          %s176 = sand.u32 %s46, 1
          %s177 = smul.addr %s176, 16
          %s178 = scalar_lea.vmem [#allocation3], %s177
          %s179 = sadd.s32 %s25, %s26
          %p180 = scmp.lt.s32.totalorder %s179, 0
          %s181 = scalar_select %p180, %s179, 0
          %s182 = smul.u32 2, %s181
          %s184 = ssub.s32 256, 256
          %185 = vsyncadd %s175, %s184
          %s186 = smul.addr %s182, 128
          %s187 = scalar_lea.hbm %s0, %s186
          %s188 = sshll.u32 %s178, 4
          %s189 = int_to_ptr.vmem [resolvable:$true] %s188
          %194 = dma.hbm_to_vmem [thread:$0]  %s187, 256, %s189, %s175, 128, 128, 8
        $region20: #{tpu_custom_call.1} parent=15 // pred_fallthru
          _
        // Predicated region
        $region21: #{tpu_custom_call.1} parent=15 // pred_check
          %p195 = pneg %p88
        $region22: #{tpu_custom_call.1} parent=15 // pred_check_branch
          %197 = sbr.rel (%p195) target = $region24
        $region23: #{tpu_custom_call.1} parent=15 // pred_region
          %s198 = sand.u32 %s18, 1
          %s199 = scalar_lea.sflag [#allocation7], %s198
          %s200 = sand.u32 %s78, 1
          %s201 = smul.addr %s200, 16
          %s202 = scalar_lea.vmem [#allocation6], %s201
          %s203 = sadd.s32 %s25, %s26
          %p204 = scmp.lt.s32.totalorder %s203, 0
          %s205 = scalar_select %p204, %s203, 0
          %s206 = smul.u32 2, %s205
          %s208 = ssub.s32 256, 256
          %209 = vsyncadd %s199, %s208
          %s210 = smul.addr %s206, 128
          %s211 = scalar_lea.hbm %s1, %s210
          %s212 = sshll.u32 %s202, 4
          %s213 = int_to_ptr.vmem [resolvable:$true] %s212
          %218 = dma.hbm_to_vmem [thread:$0]  %s211, 256, %s213, %s199, 128, 128, 8
        $region24: #{tpu_custom_call.1} parent=15 // pred_fallthru
          _
        // Predicated region
        $region25: #{tpu_custom_call.1} parent=15 // pred_check
          %p219 = pneg %p120
        $region26: #{tpu_custom_call.1} parent=15 // pred_check_branch
          %221 = sbr.rel (%p219) target = $region28
        $region27: #{tpu_custom_call.1} parent=15 // pred_region
          %s222 = sand.u32 %s18, 1
          %s223 = scalar_lea.sflag [#allocation7], %s222
          %s224 = sand.u32 %s110, 1
          %s225 = smul.addr %s224, 16
          %s226 = scalar_lea.vmem [#allocation8], %s225
          %s227 = sadd.s32 %s25, %s26
          %p228 = scmp.lt.s32.totalorder %s227, 0
          %s229 = scalar_select %p228, %s227, 0
          %s230 = smul.u32 2, %s229
          %s232 = ssub.s32 256, 256
          %233 = vsyncadd %s223, %s232
          %s234 = smul.addr %s230, 128
          %s235 = scalar_lea.hbm %s2, %s234
          %s236 = sshll.u32 %s226, 4
          %s237 = int_to_ptr.vmem [resolvable:$true] %s236
          %242 = dma.hbm_to_vmem [thread:$0]  %s235, 256, %s237, %s223, 128, 128, 8
        $region28: #{tpu_custom_call.1} parent=15 // pred_fallthru
          _
      $region16: #{tpu_custom_call.1} parent=5 // pred_fallthru
        _
      %p243 = scmp.le.s32.totalorder 1, %s18
      %p244 = scmp.lt.s32.totalorder %s18, 3
      %p245 = pnand %p243, %p244
      %p246 = pneg %p245
      // Predicated region
      $region29: #{tpu_custom_call.1} parent=5 // pred_check
        _
      $region30: #{tpu_custom_call.1} parent=5 // pred_check_branch
        %248 = sbr.rel (%p245) target = $region32
      $region31: #{tpu_custom_call.1} parent=5 // pred_region
        %s249 = ssub.s32 %s18, 1
        %s250 = sand.u32 %s49, 1
        %s251 = scalar_lea.sflag [#allocation4], %s250
        %s252 = sand.u32 %s49, 1
        %s253 = smul.addr %s252, 16
        %s254 = scalar_lea.vmem [#allocation3], %s253
        // Predicated region
        $region33: #{tpu_custom_call.1} parent=31 // pred_check
          %p255 = pneg %p62
        $region34: #{tpu_custom_call.1} parent=31 // pred_check_branch
          %257 = sbr.rel (%p255) target = $region36
        $region35: #{tpu_custom_call.1} parent=31 // pred_region
          %258 = dma.done %s251, 256
        $region36: #{tpu_custom_call.1} parent=31 // pred_fallthru
          _
        %s259 = sand.u32 %s23, 1
        %s260 = scalar_lea.sflag [#allocation7], %s259
        %s261 = sand.u32 %s81, 1
        %s262 = smul.addr %s261, 16
        %s263 = scalar_lea.vmem [#allocation6], %s262
        // Predicated region
        $region37: #{tpu_custom_call.1} parent=31 // pred_check
          %p264 = pneg %p94
        $region38: #{tpu_custom_call.1} parent=31 // pred_check_branch
          %266 = sbr.rel (%p264) target = $region40
        $region39: #{tpu_custom_call.1} parent=31 // pred_region
          %267 = dma.done %s260, 256
        $region40: #{tpu_custom_call.1} parent=31 // pred_fallthru
          _
        %s268 = sand.u32 %s23, 1
        %s269 = scalar_lea.sflag [#allocation7], %s268
        %s270 = sand.u32 %s113, 1
        %s271 = smul.addr %s270, 16
        %s272 = scalar_lea.vmem [#allocation8], %s271
        // Predicated region
        $region41: #{tpu_custom_call.1} parent=31 // pred_check
          %p273 = pneg %p126
        $region42: #{tpu_custom_call.1} parent=31 // pred_check_branch
          %275 = sbr.rel (%p273) target = $region44
        $region43: #{tpu_custom_call.1} parent=31 // pred_region
          %276 = dma.done %s269, 256
        $region44: #{tpu_custom_call.1} parent=31 // pred_fallthru
          _
        %s277 = sand.u32 %s49, 1
        %s278 = scalar_lea.sflag [#allocation4], %s277
        %s279 = sand.u32 %s49, 1
        %s280 = smul.addr %s279, 16
        %s281 = scalar_lea.vmem [#allocation3], %s280
        %p282 = pneg %p62
        %p283 = pneg %p59
        %s284 = sand.u32 %s23, 1
        %s285 = scalar_lea.sflag [#allocation7], %s284
        %s286 = sand.u32 %s81, 1
        %s287 = smul.addr %s286, 16
        %s288 = scalar_lea.vmem [#allocation6], %s287
        %p289 = pneg %p94
        %p290 = pneg %p91
        %s291 = sand.u32 %s23, 1
        %s292 = scalar_lea.sflag [#allocation7], %s291
        %s293 = sand.u32 %s113, 1
        %s294 = smul.addr %s293, 16
        %s295 = scalar_lea.vmem [#allocation8], %s294
        %p296 = pneg %p126
        %p297 = pneg %p123
        %p298 = pneg %p152
        %p299 = pneg %p149
        %s300 = sand.u32 %s139, 1
        %s301 = scalar_lea.sflag [#allocation5], %s300
        %s302 = sand.u32 %s139, 1
        %s303 = smul.addr %s302, 128
        %s304 = scalar_lea.smem [#allocation9], %s303
        %s305 = sadd.s32 %s27, %s28
        %p306 = scmp.lt.s32.totalorder %s305, 0
        %s307 = scalar_select %p306, %s305, 0
        %s308 = smul.u32 2, %s307
        %s309 = sadd.s32 %s27, %s28
        %p310 = scmp.lt.s32.totalorder %s309, 0
        %s311 = scalar_select %p310, %s309, 0
        %s312 = smul.u32 2, %s311
        %s313 = sadd.s32 %s27, %s28
        %p314 = scmp.lt.s32.totalorder %s313, 0
        %s315 = scalar_select %p314, %s313, 0
        %s316 = smul.u32 2, %s315
        %p317 = scmp.eq.s32.totalorder %s28, 0
        // Predicated region
        $region45: #{tpu_custom_call.1} parent=31 // pred_check
          %p318 = pneg %p317
        $region46: #{tpu_custom_call.1} parent=31 // pred_check_branch
          %320 = sbr.rel (%p318) target = $region48
        $region47: #{tpu_custom_call.1} parent=31 // pred_region
          %321 = vst [vmem:[#allocation2] sm:$0xff] 0.0
          %322 = vst [vmem:[#allocation2 + $0x8] sm:$0xff] 0.0
          %323 = vst [vmem:[#allocation2 + $0x10] sm:$0xff] 0.0
          %324 = vst [vmem:[#allocation2 + $0x18] sm:$0xff] 0.0
          %325 = vst [vmem:[#allocation2 + $0x20] sm:$0xff] 0.0
          %326 = vst [vmem:[#allocation2 + $0x28] sm:$0xff] 0.0
        $region48: #{tpu_custom_call.1} parent=31 // pred_fallthru
          _
        %v327 = vld [vmem:[%s254] sm:$0xff]
        %v328 = vld [vmem:[%s254 + $0x8] sm:$0xff]
        %vm329 = vcmp.eq.f32.partialorder %v327, 1.0
        %vm330 = vcmp.eq.f32.partialorder %v328, 1.0
        %vm331 = vcmp.lt.f32.partialorder %v327, 1.0
        %vm332 = vcmp.lt.f32.partialorder %v328, 1.0
        %s333 = sadd.s32 %s27, %s28
        %s334 = smul.u32 %s333, 16
        %v335 = vlaneseq
        %v336 = vshrl.u32 %v335, 7
        %v337 = vadd.s32 %v336, 8
        %v338 = vstv %s334
        %v339 = vadd.s32 %v336, %v338
        %v340 = vadd.s32 %v337, %v338
        %vm341 = vcmp.lt.s32.totalorder %v339, 16
        %vm342 = vcmp.lt.s32.totalorder %v340, 16
        %v343 = vsel %vm341, 1, 0
        %v344 = vsel %vm342, 1, 0
        %vm345 = vcmp.eq.s32.totalorder %v343, 1
        %vm346 = vcmp.eq.s32.totalorder %v344, 1
        %vm347 = vmand %vm329, %vm345
        %vm348 = vmand %vm330, %vm346
        %vm349 = vmand %vm331, %vm345
        %vm350 = vmand %vm332, %vm346
        %v351 = vsub.f32 1.0, %v327
        %v352 = vsub.f32 1.0, %v328
        %v353 = vmul.f32 %v351, %v351
        %v354 = vmul.f32 %v352, %v352
        %v355 = vmul.f32 %v353, %v353
        %v356 = vmul.f32 %v354, %v354
        %s357 = scalar_lea.vmem [#allocation2], 32
        %v358 = vld [vmem:[%s357] sm:$0xff]
        %v359 = vld [vmem:[%s357 + $0x8] sm:$0xff]
        %v360 = vsel %vm347, 1.0, 0.0
        %v361 = vsel %vm348, 1.0, 0.0
        %v362 = vadd.f32 %v358, %v360
        %v363 = vadd.f32 %v359, %v361
        %364 = vst [vmem:[%s357] sm:$0xff] %v362
        %365 = vst [vmem:[%s357 + $0x8] sm:$0xff] %v363
        %v366 = vld [vmem:[%s263] sm:$0xff]
        %v367 = vld [vmem:[%s263 + $0x8] sm:$0xff]
        %v368 = vsub.f32 0.0, %v366
        %v369 = vsub.f32 0.0, %v367
        %v370 = vmul.f32 %v368, 1.442695
        %v371 = vpow.pop %v370
        %v372 = vmul.f32 %v369, 1.442695
        %v373 = vpow.pop %v372
        %v374 = vadd.f32 %v371, 1.0
        %v375 = vadd.f32 %v373, 1.0
        %v376 = vrcp.pop %v374
        %v377 = vmul.f32 1.0, %v376
        %v378 = vrcp.pop %v375
        %v379 = vmul.f32 1.0, %v378
        %v380 = vmax.f32 %v377, 0.0001
        %v381 = vmax.f32 %v379, 0.0001
        %v382 = vmin.f32 %v380, 0.9999
        %v383 = vmin.f32 %v381, 0.9999
        %v384 = vlog2.pop %v377
        %v385 = vmul.f32 %v384, 0.6931472
        %v386 = vlog2.pop %v379
        %v387 = vmul.f32 %v386, 0.6931472
        %vm388 = vcmp.lt.f32.partialorder %v377, 0.0001
        %vm389 = vcmp.lt.f32.partialorder %v379, 0.0001
        %vm390 = vcmp.gt.f32.partialorder %v377, 0.9999
        %vm391 = vcmp.gt.f32.partialorder %v379, 0.9999
        %v392 = vsel %vm390, -0.000100005, %v385
        %v393 = vsel %vm391, -0.000100005, %v387
        %v394 = vsel %vm388, -9.2103405, %v392
        %v395 = vsel %vm389, -9.2103405, %v393
        %v396 = vsub.f32 %v385, %v366
        %v397 = vsub.f32 %v387, %v367
        %v398 = vsel %vm388, -0.000100005, %v396
        %v399 = vsel %vm389, -0.000100005, %v397
        %v400 = vsel %vm390, -9.2103405, %v398
        %v401 = vsel %vm391, -9.2103405, %v399
        %v402 = vsub.f32 1.0, %v382
        %v403 = vsub.f32 1.0, %v383
        %v404 = vmul.f32 %v402, %v402
        %v405 = vmul.f32 %v403, %v403
        %v406 = vmul.f32 %v394, %v404
        %v407 = vmul.f32 %v395, %v405
        %v408 = vmul.f32 %v382, %v382
        %v409 = vmul.f32 %v383, %v383
        %v410 = vmul.f32 %v400, %v408
        %v411 = vmul.f32 %v401, %v409
        %v412 = vmul.f32 %v410, %v355
        %v413 = vmul.f32 %v411, %v356
        %v414 = vld [vmem:[#allocation2] sm:$0xff]
        %v415 = vld [vmem:[#allocation2 + $0x8] sm:$0xff]
        %v416 = vsel %vm347, %v406, 0.0
        %v417 = vsel %vm348, %v407, 0.0
        %v418 = vsel %vm349, %v412, 0.0
        %v419 = vsel %vm350, %v413, 0.0
        %v420 = vadd.f32 %v416, %v418
        %v421 = vadd.f32 %v417, %v419
        %v422 = vadd.f32 %v414, %v420
        %v423 = vadd.f32 %v415, %v421
        %424 = vst [vmem:[#allocation2] sm:$0xff] %v422
        %425 = vst [vmem:[#allocation2 + $0x8] sm:$0xff] %v423
        %v426 = vld [vmem:[%s272] sm:$0xff]
        %v427 = vld [vmem:[%s272 + $0x8] sm:$0xff]
        %v428 = vsub.f32 0.0, %v426
        %v429 = vsub.f32 0.0, %v427
        %v430 = vmul.f32 %v428, 1.442695
        %v431 = vpow.pop %v430
        %v432 = vmul.f32 %v429, 1.442695
        %v433 = vpow.pop %v432
        %v434 = vadd.f32 %v431, 1.0
        %v435 = vadd.f32 %v433, 1.0
        %v436 = vrcp.pop %v434
        %v437 = vmul.f32 1.0, %v436
        %v438 = vrcp.pop %v435
        %v439 = vmul.f32 1.0, %v438
        %v440 = vmax.f32 %v437, 0.0001
        %v441 = vmax.f32 %v439, 0.0001
        %v442 = vmin.f32 %v440, 0.9999
        %v443 = vmin.f32 %v441, 0.9999
        %v444 = vlog2.pop %v437
        %v445 = vmul.f32 %v444, 0.6931472
        %v446 = vlog2.pop %v439
        %v447 = vmul.f32 %v446, 0.6931472
        %vm448 = vcmp.lt.f32.partialorder %v437, 0.0001
        %vm449 = vcmp.lt.f32.partialorder %v439, 0.0001
        %vm450 = vcmp.gt.f32.partialorder %v437, 0.9999
        %vm451 = vcmp.gt.f32.partialorder %v439, 0.9999
        %v452 = vsel %vm450, -0.000100005, %v445
        %v453 = vsel %vm451, -0.000100005, %v447
        %v454 = vsel %vm448, -9.2103405, %v452
        %v455 = vsel %vm449, -9.2103405, %v453
        %v456 = vsub.f32 %v445, %v426
        %v457 = vsub.f32 %v447, %v427
        %v458 = vsel %vm448, -0.000100005, %v456
        %v459 = vsel %vm449, -0.000100005, %v457
        %v460 = vsel %vm450, -9.2103405, %v458
        %v461 = vsel %vm451, -9.2103405, %v459
        %v462 = vsub.f32 1.0, %v442
        %v463 = vsub.f32 1.0, %v443
        %v464 = vmul.f32 %v462, %v462
        %v465 = vmul.f32 %v463, %v463
        %v466 = vmul.f32 %v454, %v464
        %v467 = vmul.f32 %v455, %v465
        %v468 = vmul.f32 %v442, %v442
        %v469 = vmul.f32 %v443, %v443
        %v470 = vmul.f32 %v460, %v468
        %v471 = vmul.f32 %v461, %v469
        %v472 = vmul.f32 %v470, %v355
        %v473 = vmul.f32 %v471, %v356
        %s474 = scalar_lea.vmem [#allocation2], 16
        %v475 = vld [vmem:[%s474] sm:$0xff]
        %v476 = vld [vmem:[%s474 + $0x8] sm:$0xff]
        %v477 = vsel %vm347, %v466, 0.0
        %v478 = vsel %vm348, %v467, 0.0
        %v479 = vsel %vm349, %v472, 0.0
        %v480 = vsel %vm350, %v473, 0.0
        %v481 = vadd.f32 %v477, %v479
        %v482 = vadd.f32 %v478, %v480
        %v483 = vadd.f32 %v475, %v481
        %v484 = vadd.f32 %v476, %v482
        %485 = vst [vmem:[%s474] sm:$0xff] %v483
        %486 = vst [vmem:[%s474 + $0x8] sm:$0xff] %v484
        // Predicated region
        $region49: #{tpu_custom_call.1} parent=31 // pred_check
          %p487 = pneg %p317
        $region50: #{tpu_custom_call.1} parent=31 // pred_check_branch
          %489 = sbr.rel (%p487) target = $region52
        $region51: #{tpu_custom_call.1} parent=31 // pred_region
          %v490 = vld [vmem:[#allocation2] sm:$0xff]
          %v491 = vld [vmem:[#allocation2 + $0x8] sm:$0xff]
          %v492 = vadd.f32 %v490, %v491
          %493 = vadd.xlane.f32.xlu0 %v492
          %v494 = vpop.xlane.xlu0 %493
          %v495 = vrot.slane %v494, 4
          %v496 = vadd.f32 %v494, %v495
          %v497 = vrot.slane %v496, 2
          %v498 = vadd.f32 %v496, %v497
          %v499 = vrot.slane %v498, 1
          %v500 = vadd.f32 %v498, %v499
          %s501 = vtos %v500
          %s502 = scalar_lea.smem %s304, 0 [#allocation9]
          %503 = sst [smem:[%s502]] %s501
          %v504 = vld [vmem:[%s474] sm:$0xff]
          %v505 = vld [vmem:[%s474 + $0x8] sm:$0xff]
          %v506 = vadd.f32 %v504, %v505
          %507 = vadd.xlane.f32.xlu0 %v506
          %v508 = vpop.xlane.xlu0 %507
          %v509 = vrot.slane %v508, 4
          %v510 = vadd.f32 %v508, %v509
          %v511 = vrot.slane %v510, 2
          %v512 = vadd.f32 %v510, %v511
          %v513 = vrot.slane %v512, 1
          %v514 = vadd.f32 %v512, %v513
          %s515 = vtos %v514
          %s516 = scalar_lea.smem %s304, 1 [#allocation9]
          %517 = sst [smem:[%s516]] %s515
          %v518 = vld [vmem:[%s357] sm:$0xff]
          %v519 = vld [vmem:[%s357 + $0x8] sm:$0xff]
          %v520 = vadd.f32 %v518, %v519
          %521 = vadd.xlane.f32.xlu0 %v520
          %v522 = vpop.xlane.xlu0 %521
          %v523 = vrot.slane %v522, 4
          %v524 = vadd.f32 %v522, %v523
          %v525 = vrot.slane %v524, 2
          %v526 = vadd.f32 %v524, %v525
          %v527 = vrot.slane %v526, 1
          %v528 = vadd.f32 %v526, %v527
          %s529 = vtos %v528
          %s530 = scalar_lea.smem %s304, 2 [#allocation9]
          %531 = sst [smem:[%s530]] %s529
        $region52: #{tpu_custom_call.1} parent=31 // pred_fallthru
          _
        %s532 = sand.u32 %s139, 1
        %s533 = scalar_lea.sflag [#allocation5], %s532
        %s534 = sand.u32 %s139, 1
        %s535 = smul.addr %s534, 128
        %s536 = scalar_lea.smem [#allocation9], %s535
        // Predicated region
        $region53: #{tpu_custom_call.1} parent=31 // pred_check
          %p537 = pneg %p149
        $region54: #{tpu_custom_call.1} parent=31 // pred_check_branch
          %539 = sbr.rel (%p537) target = $region56
        $region55: #{tpu_custom_call.1} parent=31 // pred_region
          %s541 = ssub.s32 16, 16
          %542 = vsyncadd %s533, %s541
          %s543 = smul.addr %s27, 16
          %s544 = scalar_lea.hbm %s3, %s543
          %547 = dma.smem_to_hbm %s536, 16, %s544, %s533
        $region56: #{tpu_custom_call.1} parent=31 // pred_fallthru
          _
      $region32: #{tpu_custom_call.1} parent=5 // pred_fallthru
        _
      %p548 = scmp.le.s32.totalorder 2, %s18
      // Predicated region
      $region57: #{tpu_custom_call.1} parent=5 // pred_check
        %p549 = pneg %p548
      $region58: #{tpu_custom_call.1} parent=5 // pred_check_branch
        %551 = sbr.rel (%p549) target = $region60
      $region59: #{tpu_custom_call.1} parent=5 // pred_region
        %s552 = ssub.s32 %s18, 2
        // Predicated region
        $region61: #{tpu_custom_call.1} parent=59 // pred_check
          %p553 = pneg %p155
        $region62: #{tpu_custom_call.1} parent=59 // pred_check_branch
          %555 = sbr.rel (%p553) target = $region64
        $region63: #{tpu_custom_call.1} parent=59 // pred_region
          %s556 = sand.u32 %s140, 1
          %s557 = scalar_lea.sflag [#allocation5], %s556
          %s558 = sand.u32 %s140, 1
          %s559 = smul.addr %s558, 128
          %s560 = scalar_lea.smem [#allocation9], %s559
          %561 = dma.done %s557, 16
        $region64: #{tpu_custom_call.1} parent=59 // pred_fallthru
          _
        %562 = sfence
      $region60: #{tpu_custom_call.1} parent=5 // pred_fallthru
        _
    $region6: #{tpu_custom_call.1} parent=1 // loop_footer
      %s22 = sadd.s32 1, %s18
    $region7: #{tpu_custom_call.1} parent=1 // loop_footer_branch
      %17 = sbr.rel target = $region3
    $region8: #{tpu_custom_call.1} parent=1 // loop_exit
      _
    %563 = vsyncpa [#allocation4], 1
    %s564 = scalar_lea.sflag [#allocation4], 1
    %565 = vsyncpa %s564, 1
    %566 = vsyncpa [#allocation7], 1
    %s567 = scalar_lea.sflag [#allocation7], 1
    %568 = vsyncpa %s567, 1
    %569 = vsyncpa [#allocation5], 1
    %s570 = scalar_lea.sflag [#allocation5], 1
    %571 = vsyncpa %s570, 1

</llo_original>
